<compile_context>
chip_gen: v6e
topology: v6e:2x2x1
jax: 0.10.0
libtpu: 0.0.40
codegen_flags: <defaults>
</compile_context>

<pallas_src>
import math

import jax
import jax.numpy as jnp
from jax.experimental import pallas as pl
from jax.experimental.pallas import tpu as pltpu


def _linear_mapping_kernel(x_ref, w_ref, o_ref):
    # x_ref: (tile_b, tile_n); w_ref: (1, tile_n) broadcasts over rows; o_ref: (tile_b, tile_n)
    o_ref[...] = (x_ref[...] * w_ref[...]).astype(o_ref.dtype)


_MIN_TILE_BYTES = 1 << 20        # keep per-tile >= ~1 MiB to amortize ~0.35us/step overhead
_TARGET_BATCH_BLOCKS = 4         # aim for a few pipelined steps (even count balances v7x's 2 TCs)


def _cdiv(a, b):
    return -(-a // b)


def _round_up(x, m):
    return ((x + m - 1) // m) * m


def _vmem_budget():
    """Generation-aware (per-buffer tile budget, vmem_limit_bytes)."""
    try:
        cap = pltpu.get_tpu_info().vmem_capacity_bytes
    except Exception:
        cap = 64 * 1024 * 1024   # conservative fallback (v7x physical VMEM per TC)
    vmem_limit = min(int(cap * 0.75), cap - (8 << 20))
    # Input and output tiles are each double-buffered (~4 live buffers) -> ~1/10 of limit each.
    per_buffer = max(2 << 20, vmem_limit // 10)
    return per_buffer, vmem_limit


def _choose_tiles(B, D, in_itemsize, out_itemsize, per_buffer_budget):
    """Pick (tile_b, tile_n) for a (B, D) array whose last dim is 128-aligned (or == D)."""
    itemsize = max(in_itemsize, out_itemsize)        # byte budget from the widest buffer
    min_itemsize = min(in_itemsize, out_itemsize)    # sublane packing from the narrowest dtype
    row_align = 8 * max(1, 4 // min_itemsize)

    # Feature tile: keep full D (fully contiguous per-tile DMA) unless even a row_align-row
    # slab blows the budget; then split at a 128-lane-aligned divisor.
    tile_n = D
    if D % 128 == 0 and D * row_align * itemsize > per_buffer_budget:
        max_n = max(128, per_buffer_budget // (row_align * itemsize) // 128 * 128)
        tile_n = 128
        cand = 128
        while cand <= min(D, max_n):
            if D % cand == 0:
                tile_n = cand
            cand += 128

    # Batch tile.
    row_bytes = tile_n * itemsize
    max_rows = max(row_align, per_buffer_budget // row_bytes // row_align * row_align)
    min_rows = max(row_align, _MIN_TILE_BYTES // row_bytes // row_align * row_align)

    tile_b = _round_up(_cdiv(B, _TARGET_BATCH_BLOCKS), row_align)
    tile_b = max(tile_b, min_rows)
    # Guarantee at least 2 pipelined steps (and work for both v7x TCs) whenever B splits.
    half = _round_up(_cdiv(B, 2), row_align)
    if row_align <= half < B:
        tile_b = min(tile_b, half)
    tile_b = min(tile_b, max_rows)
    tile_b = min(tile_b, _round_up(B, row_align))
    if tile_b >= B:
        tile_b = B   # full dim is always a legal block shape

    # Prefer an even batch-block count so v7x's two TensorCores stay balanced.
    n_b = _cdiv(B, tile_b)
    if n_b > 1 and n_b % 2 == 1:
        alt = _round_up(_cdiv(B, n_b + 1), row_align)
        if row_align <= alt <= max_rows and alt * row_bytes * 2 >= _MIN_TILE_BYTES \
                and _cdiv(B, alt) % 2 == 0:
            tile_b = alt
    return tile_b, tile_n


def _linear_mapping_2d(x, w_row, out_dtype):
    """x: (B, D) with D a multiple of 128 (or tiny full-dim); w_row: (D,)."""
    B, D = x.shape
    per_buffer, vmem_limit = _vmem_budget()
    tile_b, tile_n = _choose_tiles(
        B, D, jnp.dtype(x.dtype).itemsize, jnp.dtype(out_dtype).itemsize, per_buffer)

    # Feature axis is the OUTER grid dim: the weight block index is constant across the
    # inner batch loop, so the pipeline keeps the weight strip resident (no per-step DMA).
    grid = (_cdiv(D, tile_n), _cdiv(B, tile_b))

    return pl.pallas_call(
        _linear_mapping_kernel,
        out_shape=jax.ShapeDtypeStruct((B, D), out_dtype),
        grid_spec=pltpu.PrefetchScalarGridSpec(
            num_scalar_prefetch=0,
            grid=grid,
            in_specs=[
                pl.BlockSpec((tile_b, tile_n), lambda j, i: (i, j)),
                pl.BlockSpec((1, tile_n), lambda j, i: (0, j)),
            ],
            out_specs=pl.BlockSpec((tile_b, tile_n), lambda j, i: (i, j)),
        ),
        compiler_params=pltpu.CompilerParams(
            dimension_semantics=("parallel", "parallel"),
            vmem_limit_bytes=vmem_limit,
        ),
    )(x, w_row.reshape(1, -1))


def _lane_dense_repack(total, D):
    """Return (R, W, pad) with W % 128 == 0, D | W, R * W == total + pad (pad < W)."""
    W = (D * 128) // math.gcd(D, 128)          # lcm(D, 128)
    while W * 2 <= 4096 and total % (W * 2) == 0:
        W *= 2
    R = _cdiv(total, W)
    return R, W, R * W - total


def linear_mapping(inputs: jax.Array, w: jax.Array, out_dtype=None) -> jax.Array:
    """Pallas equivalent of LinearMapping.forward: inputs * w (w broadcast over all
    leading dims of `inputs`). `out_dtype` defaults to PyTorch-style promotion; pass
    inputs.dtype to keep bf16 activations in bf16 and halve the output HBM traffic."""
    D = inputs.shape[-1]
    assert w.shape == (D,), f"weight shape {w.shape} != ({D},)"
    if out_dtype is None:
        out_dtype = jnp.result_type(inputs.dtype, w.dtype)

    lead = inputs.shape[:-1]
    B = 1
    for s in lead:
        B *= s
    if B * D == 0:
        return (inputs * w).astype(out_dtype)

    if D % 128 == 0:
        out = _linear_mapping_2d(inputs.reshape(B, D), w, out_dtype)
        return out.reshape(inputs.shape)

    # Non-128-aligned feature dim: always present a lane-dense (R, W) view to the kernel
    # (unmasked full-width stores); the weight repeats with period D along lanes.
    total = B * D
    R, W, pad = _lane_dense_repack(total, D)
    x_flat = inputs.reshape(total)
    if pad:
        # Padding materializes one extra copy in the wrapper; it is < 128 rows of zeros
        # and only triggers for awkward (B, D) combinations.
        x_flat = jnp.concatenate([x_flat, jnp.zeros((pad,), inputs.dtype)])
    out = _linear_mapping_2d(x_flat.reshape(R, W), jnp.tile(w, W // D), out_dtype)
    out = out.reshape(R * W)
    if pad:
        out = out[:total]
    return out.reshape(inputs.shape)


if __name__ == "__main__":
    key = jax.random.PRNGKey(0)
    batch, input_size = 8, 32

    # Deterministic example input; weight initialized as in the module (torch.ones(input_size)).
    x = jax.random.normal(key, (batch, input_size), dtype=jnp.float32)
    w = jnp.ones((input_size,), dtype=jnp.float32)

    out = jax.block_until_ready(linear_mapping(x, w))
    ref = x * w
    assert out.shape == ref.shape and out.dtype == ref.dtype
    assert jnp.allclose(out, ref, atol=1e-6, rtol=1e-6)

    # 128-aligned path: now splits into >= 2 even batch blocks (pipelined / both v7x TCs).
    x2 = jax.random.normal(jax.random.PRNGKey(1), (1024, 512), dtype=jnp.float32)
    w2 = jax.random.normal(jax.random.PRNGKey(2), (512,), dtype=jnp.float32)
    out2 = jax.block_until_ready(linear_mapping(x2, w2))
    assert jnp.allclose(out2, x2 * w2, atol=1e-5, rtol=1e-5)

    # Awkward shape exercising the padded lane-dense repack (B*D not a multiple of lcm(D,128)).
    x3 = jax.random.normal(jax.random.PRNGKey(3), (5, 96), dtype=jnp.float32)
    w3 = jax.random.normal(jax.random.PRNGKey(4), (96,), dtype=jnp.float32)
    out3 = jax.block_until_ready(linear_mapping(x3, w3))
    assert jnp.allclose(out3, x3 * w3, atol=1e-5, rtol=1e-5)

    print("KERNEL_OK")
</pallas_src>

<mosaic_0001>
module attributes {stable_mosaic.version = 11 : i64} {
  func.func @_linear_mapping_kernel(%arg0: i32, %arg1: i32, %arg2: memref<1x256xf32, #tpu.memory_space<vmem>>, %arg3: memref<1x256xf32, #tpu.memory_space<vmem>>, %arg4: memref<1x256xf32, #tpu.memory_space<vmem>>) attributes {dimension_semantics = [#tpu.dimension_semantics<parallel>, #tpu.dimension_semantics<parallel>], iteration_bounds = array<i64: 1, 1>, scalar_prefetch = 0 : i64, scratch_operands = 0 : i64, tpu.core_type = #tpu.core_type<tc>, window_params = [{transform_indices = @transform_0, window_bounds = array<i64: 1, 256>}, {transform_indices = @transform_1, window_bounds = array<i64: 1, 256>}, {transform_indices = @transform_2, window_bounds = array<i64: 1, 256>}]} {
    %c0 = arith.constant 0 : index
    %c0_0 = arith.constant 0 : index
    %0 = vector.load %arg2[%c0, %c0_0] : memref<1x256xf32, #tpu.memory_space<vmem>>, vector<1x256xf32>
    %c0_1 = arith.constant 0 : index
    %c0_2 = arith.constant 0 : index
    %1 = vector.load %arg3[%c0_1, %c0_2] : memref<1x256xf32, #tpu.memory_space<vmem>>, vector<1x256xf32>
    %2 = arith.mulf %0, %1 : vector<1x256xf32>
    %c0_3 = arith.constant 0 : index
    %c0_4 = arith.constant 0 : index
    %3 = vector.load %arg4[%c0_3, %c0_4] : memref<1x256xf32, #tpu.memory_space<vmem>>, vector<1x256xf32>
    tpu.vector_store %arg4[%c0_3, %c0_4], %2 {strides = array<i32>} : memref<1x256xf32, #tpu.memory_space<vmem>>, vector<1x256xf32>,
    return
  }
  func.func @transform_0(%arg0: i32, %arg1: i32) -> (i32, i32) {
    %c0_i32 = arith.constant 0 : i32
    return %arg1, %arg0 : i32, i32
  }
  func.func @transform_1(%arg0: i32, %arg1: i32) -> (i32, i32) {
    %c0_i32 = arith.constant 0 : i32
    %c0_i32_0 = arith.constant 0 : i32
    return %c0_i32, %arg0 : i32, i32
  }
  func.func @transform_2(%arg0: i32, %arg1: i32) -> (i32, i32) {
    %c0_i32 = arith.constant 0 : i32
    return %arg1, %arg0 : i32, i32
  }
}

</mosaic_0001>

<llo_original>
// kernel: tpu_custom_call.1
$region0: #{tpu_custom_call.1}
  #allocation0 [shape = 'u32[]', space=smem, size = 0x4, offset = 0x4, fixed_abs, tag = 'smem constant byte address 0x4 - core index']
  #allocation1 [shape = 'u32[144,128]{1,0:T(1,128)}', space=vmem, size = 0x12000, scoped, tag = 'internal scratch']
  %s0 = inlined_call_operand.hbm [shape: f32[1,256], index: 0, kind: input, shape index: {}]
  %s1 = inlined_call_operand.hbm [shape: f32[1,256], index: 1, kind: input, shape index: {}]
  %s2 = inlined_call_operand.hbm [shape: f32[1,256], index: 2, kind: output, shape index: {}]
  %s3 = sld [smem:[#allocation0]]
  $region26: #{tpu_custom_call.1} parent=0
    _
  %s5 = ssub.s32 1, %s3
  %s6 = scalar_select 0, %s5, %s3
  $region1: #{tpu_custom_call.1} parent=0
    #allocation2 [shape = 'u8[1024]{0}', space=vmem, size = 0x400, scoped, tag = 'input window, operand 0, single buffered']
    #allocation3 [shape = 's32[1]{0}', space=sflag, size = 0x4, scoped, tag = 'scoped memory for tpu_custom_call.1']
    #allocation4 [shape = 's32[1]{0}', space=sflag, size = 0x4, scoped, tag = 'scoped memory for tpu_custom_call.1']
    #allocation5 [shape = 'u8[1024]{0}', space=vmem, size = 0x400, scoped, tag = 'input window, operand 1, single buffered']
    #allocation6 [shape = 's32[1]{0}', space=sflag, size = 0x4, scoped, tag = 'scoped memory for tpu_custom_call.1']
    #allocation7 [shape = 'u8[1024]{0}', space=vmem, size = 0x400, scoped, tag = 'output window, operand 0, single buffered']
    %7 = vsyncpa [#allocation3], 0
    %8 = vsyncpa [#allocation6], 0
    %9 = vsyncpa [#allocation4], 0
    // Predicated region
    $region2: #{tpu_custom_call.1} parent=1 // pred_check
      _
    $region3: #{tpu_custom_call.1} parent=1 // pred_check_branch
      %11 = sbr.rel (0) target = $region5
    $region4: #{tpu_custom_call.1} parent=1 // pred_region
      %s13 = ssub.s32 32, 32
      %14 = vsyncadd [#allocation3], %s13
      %s16 = sshll.u32 [#allocation2], 4
      %s17 = int_to_ptr.vmem [resolvable:$true] %s16
      %19 = dma.hbm_to_vmem [thread:$0]  %s0, 32, %s17, [#allocation3]
    $region5: #{tpu_custom_call.1} parent=1 // pred_fallthru
      _
    // Predicated region
    $region6: #{tpu_custom_call.1} parent=1 // pred_check
      _
    $region7: #{tpu_custom_call.1} parent=1 // pred_check_branch
      %21 = sbr.rel (0) target = $region9
    $region8: #{tpu_custom_call.1} parent=1 // pred_region
      %s23 = ssub.s32 32, 32
      %24 = vsyncadd [#allocation6], %s23
      %s26 = sshll.u32 [#allocation5], 4
      %s27 = int_to_ptr.vmem [resolvable:$true] %s26
      %29 = dma.hbm_to_vmem [thread:$0]  %s1, 32, %s27, [#allocation6]
    $region9: #{tpu_custom_call.1} parent=1 // pred_fallthru
      _
    // Predicated region
    $region10: #{tpu_custom_call.1} parent=1 // pred_check
      _
    $region11: #{tpu_custom_call.1} parent=1 // pred_check_branch
      %31 = sbr.rel (0) target = $region13
    $region12: #{tpu_custom_call.1} parent=1 // pred_region
      %32 = dma.done [#allocation3], 32
    $region13: #{tpu_custom_call.1} parent=1 // pred_fallthru
      _
    // Predicated region
    $region14: #{tpu_custom_call.1} parent=1 // pred_check
      _
    $region15: #{tpu_custom_call.1} parent=1 // pred_check_branch
      %34 = sbr.rel (0) target = $region17
    $region16: #{tpu_custom_call.1} parent=1 // pred_region
      %35 = dma.done [#allocation6], 32
    $region17: #{tpu_custom_call.1} parent=1 // pred_fallthru
      _
    %v36 = vld [vmem:[#allocation2] sm:$0x3]
    %v37 = vld [vmem:[#allocation5] sm:$0x3]
    %v38 = vmul.f32 %v36, %v37
    %v39 = vlaneseq
    %vm40 = vcmp.ge.s32.totalorder %v39, 0
    %vm41 = vcmp.lt.s32.totalorder %v39, 256
    %vm42 = vmand %vm40, %vm41
    %43 = vst.msk [vmem:[#allocation7] sm:$0x3] %vm42, %v38
    // Predicated region
    $region18: #{tpu_custom_call.1} parent=1 // pred_check
      _
    $region19: #{tpu_custom_call.1} parent=1 // pred_check_branch
      %45 = sbr.rel (0) target = $region21
    $region20: #{tpu_custom_call.1} parent=1 // pred_region
      %s47 = ssub.s32 32, 32
      %48 = vsyncadd [#allocation4], %s47
      %s50 = sshll.u32 [#allocation7], 4
      %s51 = int_to_ptr.vmem [resolvable:$true] %s50
      %53 = dma.vmem_to_hbm [thread:$0]  %s51, 32, %s2, [#allocation4]
    $region21: #{tpu_custom_call.1} parent=1 // pred_fallthru
      _
    // Predicated region
    $region22: #{tpu_custom_call.1} parent=1 // pred_check
      _
    $region23: #{tpu_custom_call.1} parent=1 // pred_check_branch
      %55 = sbr.rel (0) target = $region25
    $region24: #{tpu_custom_call.1} parent=1 // pred_region
      %56 = dma.done [#allocation4], 32
    $region25: #{tpu_custom_call.1} parent=1 // pred_fallthru
      _
    %57 = vsyncpa [#allocation3], 1
    %58 = vsyncpa [#allocation6], 1
    %59 = vsyncpa [#allocation4], 1

</llo_original>
